<compile_context>
chip_gen: v5e
topology: v5e:2x2
jax: 0.10.0
libtpu: 0.0.40
codegen_flags: <defaults>
</compile_context>

<pallas_src>
import functools

import jax
import jax.numpy as jnp
from jax.experimental import pallas as pl
from jax.experimental.pallas import tpu as pltpu


# ----------------------------------------------------------------------------
# Kernel
# ----------------------------------------------------------------------------
def _qnet_fused_kernel(num_hidden_layers, *refs):
    """Fused twin-head MLP: input matmul, n hidden matmuls, output matmul."""
    if num_hidden_layers > 0:
        (s_ref, a_ref, w1s_ref, w1a_ref, b1_ref,
         wh_ref, bh_ref, wo_ref, bo_ref, q_ref) = refs
    else:
        (s_ref, a_ref, w1s_ref, w1a_ref, b1_ref,
         wo_ref, bo_ref, q_ref) = refs
        wh_ref = bh_ref = None

    # Input layer (concat folded into two independent matmuls) + ReLU.
    x = jnp.dot(s_ref[...], w1s_ref[...], preferred_element_type=jnp.float32)
    x = x + jnp.dot(a_ref[...], w1a_ref[...], preferred_element_type=jnp.float32)
    x = jnp.maximum(x + b1_ref[...], 0.0)

    # Hidden layers: block-diagonal (2H, 2H) weights keep the heads independent.
    # Static Python loop: num_hidden_layers is compile-time.
    for l in range(num_hidden_layers):
        x = jnp.dot(x, wh_ref[l], preferred_element_type=jnp.float32)
        x = jnp.maximum(x + bh_ref[l], 0.0)

    # Output layer: (2H, 2) packed -> lane 0 = q1, lane 1 = q2.
    q = jnp.dot(x, wo_ref[...], preferred_element_type=jnp.float32)
    q_ref[...] = (q + bo_ref[...]).astype(q_ref.dtype)


# ----------------------------------------------------------------------------
# Parameter init (mirrors QNetwork.__init__: Xavier-uniform W, zero b)
# ----------------------------------------------------------------------------
def xavier_uniform(key, fan_in, fan_out, dtype=jnp.float32):
    bound = jnp.sqrt(6.0 / (fan_in + fan_out))
    return jax.random.uniform(key, (fan_in, fan_out), dtype=dtype,
                              minval=-bound, maxval=bound)


def init_qnetwork_params(key, num_inputs, num_actions, hidden_dim, num_hidden=2):
    """Per-head params (used by the pure-JAX reference).

    Weights are stored (in_features, out_features), i.e. transposed vs PyTorch.
    """
    d_in = num_inputs + num_actions
    n_hid = num_hidden - 1
    keys = jax.random.split(key, 2 * (2 + max(n_hid, 1)))
    ki = iter(keys)

    def make_head():
        w1 = xavier_uniform(next(ki), d_in, hidden_dim)
        b1 = jnp.zeros((1, hidden_dim), jnp.float32)
        if n_hid > 0:
            wh = jnp.stack([xavier_uniform(next(ki), hidden_dim, hidden_dim)
                            for _ in range(n_hid)], axis=0)           # (L, H, H)
        else:
            _ = next(ki)  # keep key consumption symmetric
            wh = jnp.zeros((0, hidden_dim, hidden_dim), jnp.float32)
        bh = jnp.zeros((n_hid, 1, hidden_dim), jnp.float32)
        wo = xavier_uniform(next(ki), hidden_dim, 1)
        bo = jnp.zeros((1, 1), jnp.float32)
        return (w1, b1, wh, bh, wo, bo)

    return make_head(), make_head(), n_hid


def pack_twin_head_params(params1, params2, num_inputs):
    """Pack the two heads into fused weights for the single-chain kernel."""
    w1_1, b1_1, wh_1, bh_1, wo_1, bo_1 = params1
    w1_2, b1_2, wh_2, bh_2, wo_2, bo_2 = params2
    H = w1_1.shape[1]
    n_hid = wh_1.shape[0]

    w1 = jnp.concatenate([w1_1, w1_2], axis=1)                 # (D, 2H)
    w1s, w1a = w1[:num_inputs], w1[num_inputs:]                # (Ni,2H), (Na,2H)
    b1 = jnp.concatenate([b1_1, b1_2], axis=1)                 # (1, 2H)

    if n_hid > 0:
        zeros = jnp.zeros((n_hid, H, H), jnp.float32)
        top = jnp.concatenate([wh_1, zeros], axis=2)           # (L, H, 2H)
        bot = jnp.concatenate([zeros, wh_2], axis=2)           # (L, H, 2H)
        wh = jnp.concatenate([top, bot], axis=1)               # (L, 2H, 2H)
        bh = jnp.concatenate([bh_1, bh_2], axis=2)             # (L, 1, 2H)
    else:
        wh = jnp.zeros((0, 2 * H, 2 * H), jnp.float32)
        bh = jnp.zeros((0, 1, 2 * H), jnp.float32)

    zcol = jnp.zeros((H, 1), jnp.float32)
    wo = jnp.concatenate(
        [jnp.concatenate([wo_1, zcol], axis=1),
         jnp.concatenate([zcol, wo_2], axis=1)], axis=0)       # (2H, 2)
    bo = jnp.concatenate([bo_1, bo_2], axis=1)                 # (1, 2)
    return (w1s, w1a, b1, wh, bh, wo, bo)


# ----------------------------------------------------------------------------
# Forward pass wrapper
# ----------------------------------------------------------------------------
@functools.partial(jax.jit, static_argnames=("num_hidden_layers", "block_b"))
def qnetwork_forward(state, action, packed_params, num_hidden_layers,
                     block_b=256):
    B, num_inputs = state.shape
    num_actions = action.shape[1]
    w1s, w1a, b1, wh, bh, wo, bo = packed_params
    H2 = w1s.shape[1]  # 2 * hidden_dim

    block_b = min(block_b, B)
    if B % block_b != 0:
        block_b = B  # fall back to a single batch block for odd batch sizes
    grid = (B // block_b,)

    def rep(arr):
        nd = arr.ndim
        return pl.BlockSpec(arr.shape, lambda i, _nd=nd: (0,) * _nd)

    in_arrays = [state.astype(jnp.float32), action.astype(jnp.float32),
                 w1s, w1a, b1]
    in_specs = [pl.BlockSpec((block_b, num_inputs), lambda i: (i, 0)),
                pl.BlockSpec((block_b, num_actions), lambda i: (i, 0)),
                rep(w1s), rep(w1a), rep(b1)]
    if num_hidden_layers > 0:
        in_arrays += [wh, bh]
        in_specs += [rep(wh), rep(bh)]
    in_arrays += [wo, bo]
    in_specs += [rep(wo), rep(bo)]

    # Advisory cost hint for XLA's scheduler around the custom call.
    flops = 2 * B * ((num_inputs + num_actions) * H2
                     + num_hidden_layers * H2 * H2
                     + H2 * 2)
    bytes_accessed = 4 * (B * (num_inputs + num_actions + 2)
                          + sum(int(a.size) for a in (w1s, w1a, b1, wh, bh, wo, bo)))
    cost = pl.CostEstimate(flops=flops, transcendentals=0,
                           bytes_accessed=bytes_accessed)

    kernel = functools.partial(_qnet_fused_kernel, num_hidden_layers)
    q = pl.pallas_call(
        kernel,
        out_shape=jax.ShapeDtypeStruct((B, 2), jnp.float32),
        grid=grid,
        in_specs=in_specs,
        out_specs=pl.BlockSpec((block_b, 2), lambda i: (i, 0)),
        compiler_params=pltpu.CompilerParams(
            dimension_semantics=("parallel",)),
        cost_estimate=cost,
    )(*in_arrays)

    # Lane-packed output: column 0 is q1, column 1 is q2.
    return q[:, 0:1], q[:, 1:2]


# ----------------------------------------------------------------------------
# Pure-JAX reference (matches the PyTorch forward)
# ----------------------------------------------------------------------------
def qnetwork_reference(state, action, params1, params2, num_hidden_layers):
    xu = jnp.concatenate([state, action], axis=1)

    def head(p):
        w1, b1, wh, bh, wo, bo = p
        x = jax.nn.relu(xu @ w1 + b1)
        for l in range(num_hidden_layers):
            x = jax.nn.relu(x @ wh[l] + bh[l])
        return x @ wo + bo

    return head(params1), head(params2)


if __name__ == "__main__":
    key = jax.random.PRNGKey(0)

    def run_case(num_hidden, B=8, num_inputs=24, num_actions=8, hidden_dim=32):
        k_state, k_action, k_params = jax.random.split(
            jax.random.fold_in(key, num_hidden), 3)
        state = jax.random.normal(k_state, (B, num_inputs), dtype=jnp.float32)
        action = jax.random.normal(k_action, (B, num_actions), dtype=jnp.float32)

        params1, params2, n_hid = init_qnetwork_params(
            k_params, num_inputs, num_actions, hidden_dim, num_hidden)
        packed = pack_twin_head_params(params1, params2, num_inputs)

        q1, q2 = qnetwork_forward(state, action, packed, n_hid)
        jax.block_until_ready((q1, q2))

        r1, r2 = qnetwork_reference(state, action, params1, params2, n_hid)
        assert q1.shape == (B, 1) and q2.shape == (B, 1)
        assert jnp.allclose(q1, r1, atol=1e-5, rtol=1e-5)
        assert jnp.allclose(q2, r2, atol=1e-5, rtol=1e-5)

    # Default SAC-style critic (num_hidden=2 -> one fused hidden layer) and the
    # no-hidden-layer path (num_hidden=1).
    run_case(num_hidden=2)
    run_case(num_hidden=1)

    print("KERNEL_OK")
</pallas_src>

<mosaic_0001>
module attributes {stable_mosaic.version = 11 : i64} {
  func.func @_qnet_fused_kernel(%arg0: i32, %arg1: memref<8x24xf32, #tpu.memory_space<vmem>>, %arg2: memref<8x8xf32, #tpu.memory_space<vmem>>, %arg3: memref<24x64xf32, #tpu.memory_space<vmem>>, %arg4: memref<8x64xf32, #tpu.memory_space<vmem>>, %arg5: memref<1x64xf32, #tpu.memory_space<vmem>>, %arg6: memref<1x64x64xf32, #tpu.memory_space<vmem>>, %arg7: memref<1x1x64xf32, #tpu.memory_space<vmem>>, %arg8: memref<64x2xf32, #tpu.memory_space<vmem>>, %arg9: memref<1x2xf32, #tpu.memory_space<vmem>>, %arg10: memref<8x2xf32, #tpu.memory_space<vmem>>) attributes {dimension_semantics = [#tpu.dimension_semantics<parallel>], iteration_bounds = array<i64: 1>, scalar_prefetch = 0 : i64, scratch_operands = 0 : i64, tpu.core_type = #tpu.core_type<tc>, window_params = [{transform_indices = @transform_0, window_bounds = array<i64: 8, 24>}, {transform_indices = @transform_1, window_bounds = array<i64: 8, 8>}, {pipeline_mode = #tpu.pipeline_mode<synchronous>, transform_indices = @transform_2, window_bounds = array<i64: 24, 64>}, {pipeline_mode = #tpu.pipeline_mode<synchronous>, transform_indices = @transform_3, window_bounds = array<i64: 8, 64>}, {pipeline_mode = #tpu.pipeline_mode<synchronous>, transform_indices = @transform_4, window_bounds = array<i64: 1, 64>}, {pipeline_mode = #tpu.pipeline_mode<synchronous>, transform_indices = @transform_5, window_bounds = array<i64: 1, 64, 64>}, {pipeline_mode = #tpu.pipeline_mode<synchronous>, transform_indices = @transform_6, window_bounds = array<i64: 1, 1, 64>}, {pipeline_mode = #tpu.pipeline_mode<synchronous>, transform_indices = @transform_7, window_bounds = array<i64: 64, 2>}, {pipeline_mode = #tpu.pipeline_mode<synchronous>, transform_indices = @transform_8, window_bounds = array<i64: 1, 2>}, {transform_indices = @transform_9, window_bounds = array<i64: 8, 2>}]} {
    %c0 = arith.constant 0 : index
    %c0_0 = arith.constant 0 : index
    %0 = vector.load %arg1[%c0, %c0_0] : memref<8x24xf32, #tpu.memory_space<vmem>>, vector<8x24xf32>
    %c0_1 = arith.constant 0 : index
    %c0_2 = arith.constant 0 : index
    %1 = vector.load %arg3[%c0_1, %c0_2] : memref<24x64xf32, #tpu.memory_space<vmem>>, vector<24x64xf32>
    %cst = arith.constant dense<0.000000e+00> : vector<8x64xf32>
    %2 = tpu.matmul %0, %1, %cst {dimension_numbers = #tpu.dot_dimension_numbers<[1], [0], [0], [1], [0, 0, 1, 1], [], []>} : vector<8x24xf32>, vector<24x64xf32>, vector<8x64xf32> -> vector<8x64xf32>
    %c0_3 = arith.constant 0 : index
    %c0_4 = arith.constant 0 : index
    %3 = vector.load %arg2[%c0_3, %c0_4] : memref<8x8xf32, #tpu.memory_space<vmem>>, vector<8x8xf32>
    %c0_5 = arith.constant 0 : index
    %c0_6 = arith.constant 0 : index
    %4 = vector.load %arg4[%c0_5, %c0_6] : memref<8x64xf32, #tpu.memory_space<vmem>>, vector<8x64xf32>
    %cst_7 = arith.constant dense<0.000000e+00> : vector<8x64xf32>
    %5 = tpu.matmul %3, %4, %cst_7 {dimension_numbers = #tpu.dot_dimension_numbers<[1], [0], [0], [1], [0, 0, 1, 1], [], []>} : vector<8x8xf32>, vector<8x64xf32>, vector<8x64xf32> -> vector<8x64xf32>
    %6 = arith.addf %2, %5 : vector<8x64xf32>
    %c0_8 = arith.constant 0 : index
    %c0_9 = arith.constant 0 : index
    %7 = vector.load %arg5[%c0_8, %c0_9] : memref<1x64xf32, #tpu.memory_space<vmem>>, vector<1x64xf32>
    %8 = vector.broadcast %7 : vector<1x64xf32> to vector<8x64xf32>
    %9 = arith.addf %6, %8 : vector<8x64xf32>
    %cst_10 = arith.constant 0.000000e+00 : f32
    %10 = vector.broadcast %cst_10 : f32 to vector<8x64xf32>
    %11 = arith.maximumf %9, %10 : vector<8x64xf32>
    %c0_11 = arith.constant 0 : index
    %c0_12 = arith.constant 0 : index
    %c0_13 = arith.constant 0 : index
    %12 = vector.load %arg6[%c0_11, %c0_12, %c0_13] : memref<1x64x64xf32, #tpu.memory_space<vmem>>, vector<1x64x64xf32>
    %13 = vector.shape_cast %12 : vector<1x64x64xf32> to vector<64x64xf32>
    %cst_14 = arith.constant dense<0.000000e+00> : vector<8x64xf32>
    %14 = tpu.matmul %11, %13, %cst_14 {dimension_numbers = #tpu.dot_dimension_numbers<[1], [0], [0], [1], [0, 0, 1, 1], [], []>} : vector<8x64xf32>, vector<64x64xf32>, vector<8x64xf32> -> vector<8x64xf32>
    %c0_15 = arith.constant 0 : index
    %c0_16 = arith.constant 0 : index
    %c0_17 = arith.constant 0 : index
    %15 = vector.load %arg7[%c0_15, %c0_16, %c0_17] : memref<1x1x64xf32, #tpu.memory_space<vmem>>, vector<1x1x64xf32>
    %16 = vector.shape_cast %15 : vector<1x1x64xf32> to vector<1x64xf32>
    %17 = vector.broadcast %16 : vector<1x64xf32> to vector<8x64xf32>
    %18 = arith.addf %14, %17 : vector<8x64xf32>
    %cst_18 = arith.constant 0.000000e+00 : f32
    %19 = vector.broadcast %cst_18 : f32 to vector<8x64xf32>
    %20 = arith.maximumf %18, %19 : vector<8x64xf32>
    %c0_19 = arith.constant 0 : index
    %c0_20 = arith.constant 0 : index
    %21 = vector.load %arg8[%c0_19, %c0_20] : memref<64x2xf32, #tpu.memory_space<vmem>>, vector<64x2xf32>
    %cst_21 = arith.constant dense<0.000000e+00> : vector<8x2xf32>
    %22 = tpu.matmul %20, %21, %cst_21 {dimension_numbers = #tpu.dot_dimension_numbers<[1], [0], [0], [1], [0, 0, 1, 1], [], []>} : vector<8x64xf32>, vector<64x2xf32>, vector<8x2xf32> -> vector<8x2xf32>
    %c0_22 = arith.constant 0 : index
    %c0_23 = arith.constant 0 : index
    %23 = vector.load %arg9[%c0_22, %c0_23] : memref<1x2xf32, #tpu.memory_space<vmem>>, vector<1x2xf32>
    %24 = vector.broadcast %23 : vector<1x2xf32> to vector<8x2xf32>
    %25 = arith.addf %22, %24 : vector<8x2xf32>
    %c0_24 = arith.constant 0 : index
    %c0_25 = arith.constant 0 : index
    %26 = vector.load %arg10[%c0_24, %c0_25] : memref<8x2xf32, #tpu.memory_space<vmem>>, vector<8x2xf32>
    tpu.vector_store %arg10[%c0_24, %c0_25], %25 {strides = array<i32>} : memref<8x2xf32, #tpu.memory_space<vmem>>, vector<8x2xf32>,
    return
  }
  func.func @transform_0(%arg0: i32) -> (i32, i32) {
    %c0_i32 = arith.constant 0 : i32
    %c0_i32_0 = arith.constant 0 : i32
    return %arg0, %c0_i32 : i32, i32
  }
  func.func @transform_1(%arg0: i32) -> (i32, i32) {
    %c0_i32 = arith.constant 0 : i32
    %c0_i32_0 = arith.constant 0 : i32
    return %arg0, %c0_i32 : i32, i32
  }
  func.func @transform_2(%arg0: i32) -> (i32, i32) {
    %c0_i32 = arith.constant 0 : i32
    %c0_i32_0 = arith.constant 0 : i32
    %c0_i32_1 = arith.constant 0 : i32
    return %c0_i32, %c0_i32_0 : i32, i32
  }
  func.func @transform_3(%arg0: i32) -> (i32, i32) {
    %c0_i32 = arith.constant 0 : i32
    %c0_i32_0 = arith.constant 0 : i32
    %c0_i32_1 = arith.constant 0 : i32
    return %c0_i32, %c0_i32_0 : i32, i32
  }
  func.func @transform_4(%arg0: i32) -> (i32, i32) {
    %c0_i32 = arith.constant 0 : i32
    %c0_i32_0 = arith.constant 0 : i32
    %c0_i32_1 = arith.constant 0 : i32
    return %c0_i32, %c0_i32_0 : i32, i32
  }
  func.func @transform_5(%arg0: i32) -> (i32, i32, i32) {
    %c0_i32 = arith.constant 0 : i32
    %c0_i32_0 = arith.constant 0 : i32
    %c0_i32_1 = arith.constant 0 : i32
    %c0_i32_2 = arith.constant 0 : i32
    return %c0_i32, %c0_i32_0, %c0_i32_1 : i32, i32, i32
  }
  func.func @transform_6(%arg0: i32) -> (i32, i32, i32) {
    %c0_i32 = arith.constant 0 : i32
    %c0_i32_0 = arith.constant 0 : i32
    %c0_i32_1 = arith.constant 0 : i32
    %c0_i32_2 = arith.constant 0 : i32
    return %c0_i32, %c0_i32_0, %c0_i32_1 : i32, i32, i32
  }
  func.func @transform_7(%arg0: i32) -> (i32, i32) {
    %c0_i32 = arith.constant 0 : i32
    %c0_i32_0 = arith.constant 0 : i32
    %c0_i32_1 = arith.constant 0 : i32
    return %c0_i32, %c0_i32_0 : i32, i32
  }
  func.func @transform_8(%arg0: i32) -> (i32, i32) {
    %c0_i32 = arith.constant 0 : i32
    %c0_i32_0 = arith.constant 0 : i32
    %c0_i32_1 = arith.constant 0 : i32
    return %c0_i32, %c0_i32_0 : i32, i32
  }
  func.func @transform_9(%arg0: i32) -> (i32, i32) {
    %c0_i32 = arith.constant 0 : i32
    %c0_i32_0 = arith.constant 0 : i32
    return %arg0, %c0_i32 : i32, i32
  }
}

</mosaic_0001>

<llo_original>
// kernel: qnetwork_forward.1
$region0: #{qnetwork_forward.1}
  #allocation0 [shape = 'u32[]', space=smem, size = 0x4, offset = 0x4, fixed_abs, tag = 'smem constant byte address 0x4 - core index']
  #allocation1 [shape = 'u32[72,128]{1,0:T(1,128)}', space=vmem, size = 0x9000, scoped, tag = 'internal scratch']
  %s0 = inlined_call_operand.hbm [shape: f32[8,24], index: 0, kind: input, shape index: {}]
  %s1 = inlined_call_operand.hbm [shape: f32[8,8], index: 1, kind: input, shape index: {}]
  %s2 = inlined_call_operand.hbm [shape: f32[24,64], index: 2, kind: input, shape index: {}]
  %s3 = inlined_call_operand.hbm [shape: f32[8,64], index: 3, kind: input, shape index: {}]
  %s4 = inlined_call_operand.vmem [shape: f32[1,64], index: 4, kind: input, shape index: {}]
  %s5 = inlined_call_operand.vmem [shape: f32[1,64,64], index: 5, kind: input, shape index: {}]
  %s6 = inlined_call_operand.vmem [shape: f32[1,1,64], index: 6, kind: input, shape index: {}]
  %s7 = inlined_call_operand.vmem [shape: f32[64,2], index: 7, kind: input, shape index: {}]
  %s8 = inlined_call_operand.vmem [shape: f32[1,2], index: 8, kind: input, shape index: {}]
  %s9 = inlined_call_operand.vmem [shape: f32[8,2], index: 9, kind: output, shape index: {}]
  %s10 = sld [smem:[#allocation0]]
  $region62: #{qnetwork_forward.1} parent=0
    _
  %s12 = ssub.s32 1, %s10
  %s13 = scalar_select 0, %s12, %s10
  $region1: #{qnetwork_forward.1} parent=0
    #allocation2 [shape = 'u8[4096]{0}', space=vmem, size = 0x1000, scoped, tag = 'input window, operand 0, single buffered']
    #allocation3 [shape = 's32[1]{0}', space=sflag, size = 0x4, scoped, tag = 'scoped memory for qnetwork_forward.1']
    #allocation4 [shape = 'u8[4096]{0}', space=vmem, size = 0x1000, scoped, tag = 'input window, operand 1, single buffered']
    #allocation5 [shape = 's32[1]{0}', space=sflag, size = 0x4, scoped, tag = 'scoped memory for qnetwork_forward.1']
    #allocation6 [shape = 'u8[12288]{0}', space=vmem, size = 0x3000, scoped, tag = 'input window, operand 2, single buffered']
    #allocation7 [shape = 'u8[4096]{0}', space=vmem, size = 0x1000, scoped, tag = 'input window, operand 3, single buffered']
    #allocation8 [shape = 's32[1]{0}', space=sflag, size = 0x4, scoped, tag = 'scoped memory for qnetwork_forward.1']
    %14 = vsyncpa [#allocation3], 0
    %15 = vsyncpa [#allocation5], 0
    %16 = vsyncpa [#allocation8], 0
    // Predicated region
    $region2: #{qnetwork_forward.1} parent=1 // pred_check
      _
    $region3: #{qnetwork_forward.1} parent=1 // pred_check_branch
      %18 = sbr.rel (0) target = $region5
    $region4: #{qnetwork_forward.1} parent=1 // pred_region
      %20 = vsyncadd [#allocation3], 0
      %s22 = sshll.u32 %s0, 4
      %s23 = int_to_ptr.hbm [resolvable:$true] %s22
      %s24 = sshll.u32 [#allocation2], 4
      %s25 = int_to_ptr.vmem [resolvable:$true] %s24
      %27 = dma.hbm_to_vmem [thread:$0]  %s23, 128, %s25, [#allocation3]
    $region5: #{qnetwork_forward.1} parent=1 // pred_fallthru
      _
    // Predicated region
    $region6: #{qnetwork_forward.1} parent=1 // pred_check
      _
    $region7: #{qnetwork_forward.1} parent=1 // pred_check_branch
      %29 = sbr.rel (0) target = $region9
    $region8: #{qnetwork_forward.1} parent=1 // pred_region
      %31 = vsyncadd [#allocation5], 0
      %s33 = sshll.u32 %s1, 4
      %s34 = int_to_ptr.hbm [resolvable:$true] %s33
      %s35 = sshll.u32 [#allocation4], 4
      %s36 = int_to_ptr.vmem [resolvable:$true] %s35
      %38 = dma.hbm_to_vmem [thread:$0]  %s34, 128, %s36, [#allocation5]
    $region9: #{qnetwork_forward.1} parent=1 // pred_fallthru
      _
    // Predicated region
    $region10: #{qnetwork_forward.1} parent=1 // pred_check
      _
    $region11: #{qnetwork_forward.1} parent=1 // pred_check_branch
      %40 = sbr.rel (0) target = $region13
    $region12: #{qnetwork_forward.1} parent=1 // pred_region
      %42 = vsyncadd [#allocation5], 0
      %s43 = sshll.u32 %s2, 4
      %s44 = int_to_ptr.hbm [resolvable:$true] %s43
      %s45 = sshll.u32 [#allocation6], 4
      %s46 = int_to_ptr.vmem [resolvable:$true] %s45
      %51 = dma.hbm_to_vmem [thread:$0]  %s44, 384, %s46, [#allocation5], 128, 128, 8
    $region13: #{qnetwork_forward.1} parent=1 // pred_fallthru
      _
    // Predicated region
    $region14: #{qnetwork_forward.1} parent=1 // pred_check
      _
    $region15: #{qnetwork_forward.1} parent=1 // pred_check_branch
      %53 = sbr.rel (0) target = $region17
    $region16: #{qnetwork_forward.1} parent=1 // pred_region
      %55 = vsyncadd [#allocation8], 0
      %s57 = sshll.u32 %s3, 4
      %s58 = int_to_ptr.hbm [resolvable:$true] %s57
      %s59 = sshll.u32 [#allocation7], 4
      %s60 = int_to_ptr.vmem [resolvable:$true] %s59
      %62 = dma.hbm_to_vmem [thread:$0]  %s58, 128, %s60, [#allocation8]
    $region17: #{qnetwork_forward.1} parent=1 // pred_fallthru
      _
    // Predicated region
    $region18: #{qnetwork_forward.1} parent=1 // pred_check
      _
    $region19: #{qnetwork_forward.1} parent=1 // pred_check_branch
      %64 = sbr.rel (0) target = $region21
    $region20: #{qnetwork_forward.1} parent=1 // pred_region
      _
    $region21: #{qnetwork_forward.1} parent=1 // pred_fallthru
      _
    // Predicated region
    $region22: #{qnetwork_forward.1} parent=1 // pred_check
      _
    $region23: #{qnetwork_forward.1} parent=1 // pred_check_branch
      %66 = sbr.rel (0) target = $region25
    $region24: #{qnetwork_forward.1} parent=1 // pred_region
      _
    $region25: #{qnetwork_forward.1} parent=1 // pred_fallthru
      _
    // Predicated region
    $region26: #{qnetwork_forward.1} parent=1 // pred_check
      _
    $region27: #{qnetwork_forward.1} parent=1 // pred_check_branch
      %68 = sbr.rel (0) target = $region29
    $region28: #{qnetwork_forward.1} parent=1 // pred_region
      _
    $region29: #{qnetwork_forward.1} parent=1 // pred_fallthru
      _
    // Predicated region
    $region30: #{qnetwork_forward.1} parent=1 // pred_check
      _
    $region31: #{qnetwork_forward.1} parent=1 // pred_check_branch
      %70 = sbr.rel (0) target = $region33
    $region32: #{qnetwork_forward.1} parent=1 // pred_region
      _
    $region33: #{qnetwork_forward.1} parent=1 // pred_fallthru
      _
    // Predicated region
    $region34: #{qnetwork_forward.1} parent=1 // pred_check
      _
    $region35: #{qnetwork_forward.1} parent=1 // pred_check_branch
      %72 = sbr.rel (0) target = $region37
    $region36: #{qnetwork_forward.1} parent=1 // pred_region
      _
    $region37: #{qnetwork_forward.1} parent=1 // pred_fallthru
      _
    // Predicated region
    $region38: #{qnetwork_forward.1} parent=1 // pred_check
      _
    $region39: #{qnetwork_forward.1} parent=1 // pred_check_branch
      %74 = sbr.rel (0) target = $region41
    $region40: #{qnetwork_forward.1} parent=1 // pred_region
      %76 = dma.done [#allocation3], 128
    $region41: #{qnetwork_forward.1} parent=1 // pred_fallthru
      _
    // Predicated region
    $region42: #{qnetwork_forward.1} parent=1 // pred_check
      _
    $region43: #{qnetwork_forward.1} parent=1 // pred_check_branch
      %78 = sbr.rel (0) target = $region45
    $region44: #{qnetwork_forward.1} parent=1 // pred_region
      %80 = dma.done [#allocation5], 128
    $region45: #{qnetwork_forward.1} parent=1 // pred_fallthru
      _
    // Predicated region
    $region46: #{qnetwork_forward.1} parent=1 // pred_check
      _
    $region47: #{qnetwork_forward.1} parent=1 // pred_check_branch
      %82 = sbr.rel (0) target = $region49
    $region48: #{qnetwork_forward.1} parent=1 // pred_region
      %84 = dma.done [#allocation5], 384
    $region49: #{qnetwork_forward.1} parent=1 // pred_fallthru
      _
    // Predicated region
    $region50: #{qnetwork_forward.1} parent=1 // pred_check
      _
    $region51: #{qnetwork_forward.1} parent=1 // pred_check_branch
      %86 = sbr.rel (0) target = $region53
    $region52: #{qnetwork_forward.1} parent=1 // pred_region
      %88 = dma.done [#allocation8], 128
    $region53: #{qnetwork_forward.1} parent=1 // pred_fallthru
      _
    %v89 = vld [vmem:[#allocation2] sm:$0xff]
    %v90 = vld [vmem:[#allocation6] sm:$0xff]
    %v91 = vld [vmem:[#allocation6 + $0x8] sm:$0xff]
    %v92 = vld [vmem:[#allocation6 + $0x10] sm:$0xff]
    %v93 = vld [vmem:[#allocation4] sm:$0xff]
    %v94 = vld [vmem:[#allocation7] sm:$0xff]
    %vm95 = vcmask 64512
    %v97 = vsel %vm95, %v93, 0
    %99 = vmatpush.msra.mxu0 0.0
    %100 = vmatpush.msra.mxu0 0.0
    %101 = vmatpush.msra.mxu0 0.0
    %102 = vmatpush.msra.mxu0 0.0
    %103 = vmatpush.msra.mxu0 0.0
    %104 = vmatpush.msra.mxu0 0.0
    %105 = vmatpush.msra.mxu0 0.0
    %106 = vmatpush.msra.mxu0 0.0
    %107 = vmatpush.msra.mxu0 0.0
    %108 = vmatpush.msra.mxu0 0.0
    %109 = vmatpush.msra.mxu0 0.0
    %110 = vmatpush.msra.mxu0 0.0
    %111 = vmatpush.msra.mxu0 0.0
    %112 = vmatpush.msra.mxu0 0.0
    %113 = vmatpush.msra.mxu0 0.0
    %114 = vmatpush.msra.mxu0 %v94
    %115 = vmatmul.f32.gmra.mxu0 %v97
    %v116 = vpop.f32.mrf.mxu0
    %v117 = vadd.f32 0.0, %v116
    %118 = vdwg.mxu0
    %vm119 = vcmask 195584
    %v121 = vsel %vm119, %v89, 0
    %123 = vmatpush.msra.mxu0 0.0
    %124 = vmatpush.msra.mxu0 0.0
    %125 = vmatpush.msra.mxu0 0.0
    %126 = vmatpush.msra.mxu0 0.0
    %127 = vmatpush.msra.mxu0 0.0
    %128 = vmatpush.msra.mxu0 0.0
    %129 = vmatpush.msra.mxu0 0.0
    %130 = vmatpush.msra.mxu0 0.0
    %131 = vmatpush.msra.mxu0 0.0
    %132 = vmatpush.msra.mxu0 0.0
    %133 = vmatpush.msra.mxu0 0.0
    %134 = vmatpush.msra.mxu0 0.0
    %135 = vmatpush.msra.mxu0 0.0
    %136 = vmatpush.msra.mxu0 %v92
    %137 = vmatpush.msra.mxu0 %v91
    %138 = vmatpush.msra.mxu0 %v90
    %139 = vmatmul.f32.gmra.mxu0 %v121
    %v140 = vpop.f32.mrf.mxu0
    %v141 = vadd.f32 %v117, %v140
    %142 = vdwg.mxu0
    %v143 = vld [vmem:[%s4] sm:$0x1]
    %v145 = vperm.slane %v143, 0
    %v147 = vadd.f32 %v141, %v145
    %v148 = vmax.f32 %v147, 0.0
    %v149 = vld [vmem:[%s5] sm:$0xff]
    %v150 = vld [vmem:[%s5 + $0x8] sm:$0xff]
    %v151 = vld [vmem:[%s5 + $0x10] sm:$0xff]
    %v152 = vld [vmem:[%s5 + $0x18] sm:$0xff]
    %v153 = vld [vmem:[%s5 + $0x20] sm:$0xff]
    %v154 = vld [vmem:[%s5 + $0x28] sm:$0xff]
    %v155 = vld [vmem:[%s5 + $0x30] sm:$0xff]
    %v156 = vld [vmem:[%s5 + $0x38] sm:$0xff]
    %v157 = vld [vmem:[%s6] sm:$0x1]
    %v159 = vperm.slane %v157, 0
    %vm161 = vcmask 523264
    %v163 = vsel %vm161, %v148, 0
    %165 = vmatpush.msra.mxu0 0.0
    %166 = vmatpush.msra.mxu0 0.0
    %167 = vmatpush.msra.mxu0 0.0
    %168 = vmatpush.msra.mxu0 0.0
    %169 = vmatpush.msra.mxu0 0.0
    %170 = vmatpush.msra.mxu0 0.0
    %171 = vmatpush.msra.mxu0 0.0
    %172 = vmatpush.msra.mxu0 0.0
    %173 = vmatpush.msra.mxu0 %v156
    %174 = vmatpush.msra.mxu0 %v155
    %175 = vmatpush.msra.mxu0 %v154
    %176 = vmatpush.msra.mxu0 %v153
    %177 = vmatpush.msra.mxu0 %v152
    %178 = vmatpush.msra.mxu0 %v151
    %179 = vmatpush.msra.mxu0 %v150
    %180 = vmatpush.msra.mxu0 %v149
    %181 = vmatmul.f32.gmra.mxu0 %v163
    %v182 = vpop.f32.mrf.mxu0
    %v183 = vadd.f32 %v159, %v182
    %184 = vdwg.mxu0
    %v185 = vmax.f32 %v183, 0.0
    %v186 = vld [vmem:[%s7] sm:$0xff]
    %v187 = vld [vmem:[%s7 + $0x8] sm:$0xff]
    %v188 = vld [vmem:[%s7 + $0x10] sm:$0xff]
    %v189 = vld [vmem:[%s7 + $0x18] sm:$0xff]
    %v190 = vld [vmem:[%s7 + $0x20] sm:$0xff]
    %v191 = vld [vmem:[%s7 + $0x28] sm:$0xff]
    %v192 = vld [vmem:[%s7 + $0x30] sm:$0xff]
    %v193 = vld [vmem:[%s7 + $0x38] sm:$0xff]
    %v194 = vld [vmem:[%s8] sm:$0x1]
    %v196 = vperm.slane %v194, 0
    %v199 = vsel %vm161, %v185, 0
    %201 = vmatpush.msra.mxu0 0.0
    %202 = vmatpush.msra.mxu0 0.0
    %203 = vmatpush.msra.mxu0 0.0
    %204 = vmatpush.msra.mxu0 0.0
    %205 = vmatpush.msra.mxu0 0.0
    %206 = vmatpush.msra.mxu0 0.0
    %207 = vmatpush.msra.mxu0 0.0
    %208 = vmatpush.msra.mxu0 0.0
    %209 = vmatpush.msra.mxu0 %v193
    %210 = vmatpush.msra.mxu0 %v192
    %211 = vmatpush.msra.mxu0 %v191
    %212 = vmatpush.msra.mxu0 %v190
    %213 = vmatpush.msra.mxu0 %v189
    %214 = vmatpush.msra.mxu0 %v188
    %215 = vmatpush.msra.mxu0 %v187
    %216 = vmatpush.msra.mxu0 %v186
    %217 = vmatmul.f32.gmra.mxu0 %v199
    %v218 = vpop.f32.mrf.mxu0
    %v219 = vadd.f32 %v196, %v218
    %220 = vdwg.mxu0
    %vm221 = vcmask 15360
    %222 = vst.msk [vmem:[%s9] sm:$0xff] %vm221, %v219
    // Predicated region
    $region54: #{qnetwork_forward.1} parent=1 // pred_check
      _
    $region55: #{qnetwork_forward.1} parent=1 // pred_check_branch
      %224 = sbr.rel (0) target = $region57
    $region56: #{qnetwork_forward.1} parent=1 // pred_region
      _
    $region57: #{qnetwork_forward.1} parent=1 // pred_fallthru
      _
    // Predicated region
    $region58: #{qnetwork_forward.1} parent=1 // pred_check
      _
    $region59: #{qnetwork_forward.1} parent=1 // pred_check_branch
      %226 = sbr.rel (0) target = $region61
    $region60: #{qnetwork_forward.1} parent=1 // pred_region
      _
    $region61: #{qnetwork_forward.1} parent=1 // pred_fallthru
      _
    %227 = vsyncpa [#allocation3], 1
    %228 = vsyncpa [#allocation5], 1
    %229 = vsyncpa [#allocation8], 1

</llo_original>
